<compile_context>
chip_gen: v7x
topology: tpu7x:2x2x1
jax: 0.10.0
libtpu: 0.0.40
codegen_flags: <defaults>
</compile_context>

<pallas_src>
import jax
import jax.numpy as jnp
from jax.experimental import pallas as pl
from jax.experimental.pallas import tpu as pltpu

STATE_DIM = 100
ACTION_DIM = 3
HID1 = 128
HID2 = 128

SUBLANE = 8          # f32 sublane granularity (batch tiles must be multiples)
N_OUT = 8            # output padded to 8 lanes only (writeback is tiny)
MAX_TILE_B = 1024    # batch rows per grid step; amortizes ~0.35us step overhead


def _round_up(x, m):
    return (x + m - 1) // m * m


def qnetwork_kernel(x_ref, w1_ref, b1_ref, w2_ref, b2_ref, w3_ref, b3_ref, o_ref):
    """Fused fc1+relu -> fc2+relu -> fc3 on one (tile_b, STATE_DIM) batch tile.

    Bias-add / relu / accumulation are f32.  Inputs are cast to the weight
    dtype only when they differ (so the f32 path emits no casts at all; the
    optional bf16-weight path casts activations inside the dots only).
    """
    def dot(a, w):
        if a.dtype != w.dtype:
            a = a.astype(w.dtype)
        return jnp.dot(a, w, preferred_element_type=jnp.float32)

    x = x_ref[...]                                                  # [TB, 100]
    h1 = jnp.maximum(dot(x, w1_ref[...]) + b1_ref[...], 0.0)        # relu(fc1)
    h2 = jnp.maximum(dot(h1, w2_ref[...]) + b2_ref[...], 0.0)       # relu(fc2)
    q = dot(h2, w3_ref[...]) + b3_ref[...]                          # fc3
    o_ref[...] = q.astype(o_ref.dtype)


@jax.jit
def qnetwork_forward(x, prepared):
    """x: [B, STATE_DIM] (f32 or bf16). prepared: dict of prepared params."""
    w1, b1, w2, b2, w3, b3 = (prepared["w1"], prepared["b1"], prepared["w2"],
                              prepared["b2"], prepared["w3"], prepared["b3"])
    B = x.shape[0]

    # Batch tile: big enough to amortize per-step overhead, but keep >= 2 grid
    # steps when possible so v7x's two TensorCores both get work.
    tile_b = max(SUBLANE, min(MAX_TILE_B, _round_up(pl.cdiv(B, 2), SUBLANE)))
    b_pad = _round_up(B, tile_b)
    if b_pad != B:                       # batch-only pad (no K pad of x)
        x = jnp.pad(x, ((0, b_pad - B), (0, 0)))

    out = pl.pallas_call(
        qnetwork_kernel,
        out_shape=jax.ShapeDtypeStruct((b_pad, N_OUT), jnp.float32),
        grid=(b_pad // tile_b,),
        in_specs=[
            pl.BlockSpec((tile_b, STATE_DIM), lambda i: (i, 0)),   # x: batch-tiled
            pl.BlockSpec((STATE_DIM, HID1),   lambda i: (0, 0)),   # weights/biases:
            pl.BlockSpec((1, HID1),           lambda i: (0, 0)),   # VMEM-resident
            pl.BlockSpec((HID1, HID2),        lambda i: (0, 0)),   # across grid
            pl.BlockSpec((1, HID2),           lambda i: (0, 0)),   # steps
            pl.BlockSpec((HID2, N_OUT),       lambda i: (0, 0)),
            pl.BlockSpec((1, N_OUT),          lambda i: (0, 0)),
        ],
        out_specs=pl.BlockSpec((tile_b, N_OUT), lambda i: (i, 0)),
        compiler_params=pltpu.CompilerParams(
            dimension_semantics=("parallel",)),
    )(x, w1, b1, w2, b2, w3, b3)

    return out[:B, :ACTION_DIM]


def init_params(key):
    """Deterministic init mirroring nn.Linear's U(-1/sqrt(fan_in), 1/sqrt(fan_in)).

    Weights are stored transposed ([in, out]) relative to PyTorch's [out, in]
    so the kernel can do x @ W directly.
    """
    def linear(key, fan_in, fan_out):
        kw, kb = jax.random.split(key)
        bound = 1.0 / jnp.sqrt(float(fan_in))
        w = jax.random.uniform(kw, (fan_in, fan_out), jnp.float32, -bound, bound)
        b = jax.random.uniform(kb, (1, fan_out), jnp.float32, -bound, bound)
        return w, b

    k1, k2, k3 = jax.random.split(key, 3)
    w1, b1 = linear(k1, STATE_DIM, HID1)
    w2, b2 = linear(k2, HID1, HID2)
    w3, b3 = linear(k3, HID2, ACTION_DIM)
    return {"w1": w1, "b1": b1, "w2": w2, "b2": b2, "w3": w3, "b3": b3}


def prepare_params(params, weight_dtype=jnp.float32):
    """One-time layout plumbing: pad only the output dim 3 -> N_OUT with zeros.

    weight_dtype=jnp.bfloat16 is optional (v6e/v7x); keep f32 on v5e — the
    kernel is DMA-bound so bf16 weights give no speedup there and the extra
    activation casts cost VPU work.
    """
    w1 = params["w1"].astype(weight_dtype)                       # (100, 128)
    w2 = params["w2"].astype(weight_dtype)                       # (128, 128)
    w3 = jnp.pad(params["w3"],
                 ((0, 0), (0, N_OUT - ACTION_DIM))).astype(weight_dtype)
    b1 = params["b1"].astype(jnp.float32)
    b2 = params["b2"].astype(jnp.float32)
    b3 = jnp.pad(params["b3"],
                 ((0, 0), (0, N_OUT - ACTION_DIM))).astype(jnp.float32)
    return {"w1": w1, "b1": b1, "w2": w2, "b2": b2, "w3": w3, "b3": b3}


def _reference(x, params):
    h1 = jnp.maximum(x @ params["w1"] + params["b1"], 0.0)
    h2 = jnp.maximum(h1 @ params["w2"] + params["b2"], 0.0)
    return h2 @ params["w3"] + params["b3"]


if __name__ == "__main__":
    key = jax.random.PRNGKey(0)
    k_params, k_x1, k_x2, k_x3 = jax.random.split(key, 4)

    params = init_params(k_params)
    prepared_f32 = prepare_params(params, weight_dtype=jnp.float32)

    # --- small batch (8): single grid step, f32 weights ---
    batch = 8
    x = jax.random.normal(k_x1, (batch, STATE_DIM), jnp.float32)
    q = qnetwork_forward(x, prepared_f32)
    jax.block_until_ready(q)
    q_ref = _reference(x, params)
    assert q.shape == (batch, ACTION_DIM)
    assert jnp.allclose(q, q_ref, atol=1e-4, rtol=1e-4)

    # --- non-aligned batch (300): 2 grid steps + batch-pad path ---
    batch2 = 300
    x2 = jax.random.normal(k_x2, (batch2, STATE_DIM), jnp.float32)
    q2 = qnetwork_forward(x2, prepared_f32)
    jax.block_until_ready(q2)
    q2_ref = _reference(x2, params)
    assert q2.shape == (batch2, ACTION_DIM)
    assert jnp.allclose(q2, q2_ref, atol=1e-4, rtol=1e-4)

    # --- large batch (2048): exercises the 1024-row tile, 2 grid steps ---
    batch3 = 2048
    x3 = jax.random.normal(k_x3, (batch3, STATE_DIM), jnp.float32)
    q3 = qnetwork_forward(x3, prepared_f32)
    jax.block_until_ready(q3)
    q3_ref = _reference(x3, params)
    assert q3.shape == (batch3, ACTION_DIM)
    assert jnp.allclose(q3, q3_ref, atol=1e-4, rtol=1e-4)

    # --- optional bf16-weight path (v6e/v7x); activations cast only in-dot ---
    prepared_bf16 = prepare_params(params, weight_dtype=jnp.bfloat16)
    q2_bf16 = qnetwork_forward(x2, prepared_bf16)
    jax.block_until_ready(q2_bf16)
    assert q2_bf16.shape == (batch2, ACTION_DIM)
    assert bool(jnp.all(jnp.isfinite(q2_bf16)))
    assert jnp.allclose(q2_bf16, q2_ref, atol=0.1, rtol=0.05)

    print("KERNEL_OK")
</pallas_src>

<mosaic_0001>
module attributes {stable_mosaic.version = 11 : i64} {
  func.func @qnetwork_kernel(%arg0: i32, %arg1: memref<8x100xf32, #tpu.memory_space<vmem>>, %arg2: memref<100x128xf32, #tpu.memory_space<vmem>>, %arg3: memref<1x128xf32, #tpu.memory_space<vmem>>, %arg4: memref<128x128xf32, #tpu.memory_space<vmem>>, %arg5: memref<1x128xf32, #tpu.memory_space<vmem>>, %arg6: memref<128x8xf32, #tpu.memory_space<vmem>>, %arg7: memref<1x8xf32, #tpu.memory_space<vmem>>, %arg8: memref<8x8xf32, #tpu.memory_space<vmem>>) attributes {dimension_semantics = [#tpu.dimension_semantics<parallel>], iteration_bounds = array<i64: 1>, scalar_prefetch = 0 : i64, scratch_operands = 0 : i64, tpu.core_type = #tpu.core_type<tc>, window_params = [{transform_indices = @transform_0, window_bounds = array<i64: 8, 100>}, {pipeline_mode = #tpu.pipeline_mode<synchronous>, transform_indices = @transform_1, window_bounds = array<i64: 100, 128>}, {pipeline_mode = #tpu.pipeline_mode<synchronous>, transform_indices = @transform_2, window_bounds = array<i64: 1, 128>}, {pipeline_mode = #tpu.pipeline_mode<synchronous>, transform_indices = @transform_3, window_bounds = array<i64: 128, 128>}, {pipeline_mode = #tpu.pipeline_mode<synchronous>, transform_indices = @transform_4, window_bounds = array<i64: 1, 128>}, {pipeline_mode = #tpu.pipeline_mode<synchronous>, transform_indices = @transform_5, window_bounds = array<i64: 128, 8>}, {pipeline_mode = #tpu.pipeline_mode<synchronous>, transform_indices = @transform_6, window_bounds = array<i64: 1, 8>}, {transform_indices = @transform_7, window_bounds = array<i64: 8, 8>}]} {
    %c0 = arith.constant 0 : index
    %c0_0 = arith.constant 0 : index
    %0 = vector.load %arg1[%c0, %c0_0] : memref<8x100xf32, #tpu.memory_space<vmem>>, vector<8x100xf32>
    %c0_1 = arith.constant 0 : index
    %c0_2 = arith.constant 0 : index
    %1 = vector.load %arg2[%c0_1, %c0_2] : memref<100x128xf32, #tpu.memory_space<vmem>>, vector<100x128xf32>
    %cst = arith.constant dense<0.000000e+00> : vector<8x128xf32>
    %2 = tpu.matmul %0, %1, %cst {dimension_numbers = #tpu.dot_dimension_numbers<[1], [0], [0], [1], [0, 0, 1, 1], [], []>} : vector<8x100xf32>, vector<100x128xf32>, vector<8x128xf32> -> vector<8x128xf32>
    %c0_3 = arith.constant 0 : index
    %c0_4 = arith.constant 0 : index
    %3 = vector.load %arg3[%c0_3, %c0_4] : memref<1x128xf32, #tpu.memory_space<vmem>>, vector<1x128xf32>
    %4 = vector.broadcast %3 : vector<1x128xf32> to vector<8x128xf32>
    %5 = arith.addf %2, %4 : vector<8x128xf32>
    %cst_5 = arith.constant 0.000000e+00 : f32
    %6 = vector.broadcast %cst_5 : f32 to vector<8x128xf32>
    %7 = arith.maximumf %5, %6 : vector<8x128xf32>
    %c0_6 = arith.constant 0 : index
    %c0_7 = arith.constant 0 : index
    %8 = vector.load %arg4[%c0_6, %c0_7] : memref<128x128xf32, #tpu.memory_space<vmem>>, vector<128x128xf32>
    %cst_8 = arith.constant dense<0.000000e+00> : vector<8x128xf32>
    %9 = tpu.matmul %7, %8, %cst_8 {dimension_numbers = #tpu.dot_dimension_numbers<[1], [0], [0], [1], [0, 0, 1, 1], [], []>} : vector<8x128xf32>, vector<128x128xf32>, vector<8x128xf32> -> vector<8x128xf32>
    %c0_9 = arith.constant 0 : index
    %c0_10 = arith.constant 0 : index
    %10 = vector.load %arg5[%c0_9, %c0_10] : memref<1x128xf32, #tpu.memory_space<vmem>>, vector<1x128xf32>
    %11 = vector.broadcast %10 : vector<1x128xf32> to vector<8x128xf32>
    %12 = arith.addf %9, %11 : vector<8x128xf32>
    %cst_11 = arith.constant 0.000000e+00 : f32
    %13 = vector.broadcast %cst_11 : f32 to vector<8x128xf32>
    %14 = arith.maximumf %12, %13 : vector<8x128xf32>
    %c0_12 = arith.constant 0 : index
    %c0_13 = arith.constant 0 : index
    %15 = vector.load %arg6[%c0_12, %c0_13] : memref<128x8xf32, #tpu.memory_space<vmem>>, vector<128x8xf32>
    %cst_14 = arith.constant dense<0.000000e+00> : vector<8x8xf32>
    %16 = tpu.matmul %14, %15, %cst_14 {dimension_numbers = #tpu.dot_dimension_numbers<[1], [0], [0], [1], [0, 0, 1, 1], [], []>} : vector<8x128xf32>, vector<128x8xf32>, vector<8x8xf32> -> vector<8x8xf32>
    %c0_15 = arith.constant 0 : index
    %c0_16 = arith.constant 0 : index
    %17 = vector.load %arg7[%c0_15, %c0_16] : memref<1x8xf32, #tpu.memory_space<vmem>>, vector<1x8xf32>
    %18 = vector.broadcast %17 : vector<1x8xf32> to vector<8x8xf32>
    %19 = arith.addf %16, %18 : vector<8x8xf32>
    %c0_17 = arith.constant 0 : index
    %c0_18 = arith.constant 0 : index
    %20 = vector.load %arg8[%c0_17, %c0_18] : memref<8x8xf32, #tpu.memory_space<vmem>>, vector<8x8xf32>
    tpu.vector_store %arg8[%c0_17, %c0_18], %19 {strides = array<i32>} : memref<8x8xf32, #tpu.memory_space<vmem>>, vector<8x8xf32>,
    return
  }
  func.func @transform_0(%arg0: i32) -> (i32, i32) {
    %c0_i32 = arith.constant 0 : i32
    %c0_i32_0 = arith.constant 0 : i32
    return %arg0, %c0_i32 : i32, i32
  }
  func.func @transform_1(%arg0: i32) -> (i32, i32) {
    %c0_i32 = arith.constant 0 : i32
    %c0_i32_0 = arith.constant 0 : i32
    %c0_i32_1 = arith.constant 0 : i32
    return %c0_i32, %c0_i32_0 : i32, i32
  }
  func.func @transform_2(%arg0: i32) -> (i32, i32) {
    %c0_i32 = arith.constant 0 : i32
    %c0_i32_0 = arith.constant 0 : i32
    %c0_i32_1 = arith.constant 0 : i32
    return %c0_i32, %c0_i32_0 : i32, i32
  }
  func.func @transform_3(%arg0: i32) -> (i32, i32) {
    %c0_i32 = arith.constant 0 : i32
    %c0_i32_0 = arith.constant 0 : i32
    %c0_i32_1 = arith.constant 0 : i32
    return %c0_i32, %c0_i32_0 : i32, i32
  }
  func.func @transform_4(%arg0: i32) -> (i32, i32) {
    %c0_i32 = arith.constant 0 : i32
    %c0_i32_0 = arith.constant 0 : i32
    %c0_i32_1 = arith.constant 0 : i32
    return %c0_i32, %c0_i32_0 : i32, i32
  }
  func.func @transform_5(%arg0: i32) -> (i32, i32) {
    %c0_i32 = arith.constant 0 : i32
    %c0_i32_0 = arith.constant 0 : i32
    %c0_i32_1 = arith.constant 0 : i32
    return %c0_i32, %c0_i32_0 : i32, i32
  }
  func.func @transform_6(%arg0: i32) -> (i32, i32) {
    %c0_i32 = arith.constant 0 : i32
    %c0_i32_0 = arith.constant 0 : i32
    %c0_i32_1 = arith.constant 0 : i32
    return %c0_i32, %c0_i32_0 : i32, i32
  }
  func.func @transform_7(%arg0: i32) -> (i32, i32) {
    %c0_i32 = arith.constant 0 : i32
    %c0_i32_0 = arith.constant 0 : i32
    return %arg0, %c0_i32 : i32, i32
  }
}

</mosaic_0001>

<llo_original>
// kernel: qnetwork_forward.1
$region0: #{qnetwork_forward.1}
  #allocation0 [shape = 'u32[]', space=smem, size = 0x4, offset = 0x4, fixed_abs, tag = 'smem constant byte address 0x4 - core index']
  #allocation1 [shape = 'u32[144,128]{1,0:T(1,128)}', space=vmem, size = 0x12000, scoped, tag = 'internal scratch']
  %s0 = inlined_call_operand.vmem [shape: f32[8,100], index: 0, kind: input, shape index: {}]
  %s1 = inlined_call_operand.hbm [shape: f32[100,128], index: 1, kind: input, shape index: {}]
  %s2 = inlined_call_operand.vmem [shape: f32[1,128], index: 2, kind: input, shape index: {}]
  %s3 = inlined_call_operand.vmem [shape: f32[128,128], index: 3, kind: input, shape index: {}]
  %s4 = inlined_call_operand.vmem [shape: f32[1,128], index: 4, kind: input, shape index: {}]
  %s5 = inlined_call_operand.vmem [shape: f32[128,8], index: 5, kind: input, shape index: {}]
  %s6 = inlined_call_operand.vmem [shape: f32[1,8], index: 6, kind: input, shape index: {}]
  %s7 = inlined_call_operand.vmem [shape: f32[8,8], index: 7, kind: output, shape index: {}]
  %s8 = sld [smem:[#allocation0]]
  $region42: #{qnetwork_forward.1} parent=0
    _
  %s10 = ssub.s32 1, %s8
  %s11 = scalar_select 0, %s10, %s8
  $region1: #{qnetwork_forward.1} parent=0
    #allocation2 [shape = 'u8[53248]{0}', space=vmem, size = 0xd000, scoped, tag = 'input window, operand 1, single buffered']
    #allocation3 [shape = 's32[1]{0}', space=sflag, size = 0x4, scoped, tag = 'scoped memory for qnetwork_forward.1']
    %12 = vsyncpa [#allocation3], 0
    // Predicated region
    $region2: #{qnetwork_forward.1} parent=1 // pred_check
      _
    $region3: #{qnetwork_forward.1} parent=1 // pred_check_branch
      %14 = sbr.rel (0) target = $region5
    $region4: #{qnetwork_forward.1} parent=1 // pred_region
      _
    $region5: #{qnetwork_forward.1} parent=1 // pred_fallthru
      _
    // Predicated region
    $region6: #{qnetwork_forward.1} parent=1 // pred_check
      _
    $region7: #{qnetwork_forward.1} parent=1 // pred_check_branch
      %16 = sbr.rel (0) target = $region9
    $region8: #{qnetwork_forward.1} parent=1 // pred_region
      %s18 = ssub.s32 1664, 1664
      %19 = vsyncadd [#allocation3], %s18
      %s20 = sshll.u32 [#allocation2], 4
      %s21 = int_to_ptr.vmem [resolvable:$true] %s20
      %26 = dma.hbm_to_vmem [thread:$0]  %s1, 1664, %s21, [#allocation3], 128, 128, 8
    $region9: #{qnetwork_forward.1} parent=1 // pred_fallthru
      _
    // Predicated region
    $region10: #{qnetwork_forward.1} parent=1 // pred_check
      _
    $region11: #{qnetwork_forward.1} parent=1 // pred_check_branch
      %28 = sbr.rel (0) target = $region13
    $region12: #{qnetwork_forward.1} parent=1 // pred_region
      _
    $region13: #{qnetwork_forward.1} parent=1 // pred_fallthru
      _
    // Predicated region
    $region14: #{qnetwork_forward.1} parent=1 // pred_check
      _
    $region15: #{qnetwork_forward.1} parent=1 // pred_check_branch
      %30 = sbr.rel (0) target = $region17
    $region16: #{qnetwork_forward.1} parent=1 // pred_region
      _
    $region17: #{qnetwork_forward.1} parent=1 // pred_fallthru
      _
    // Predicated region
    $region18: #{qnetwork_forward.1} parent=1 // pred_check
      _
    $region19: #{qnetwork_forward.1} parent=1 // pred_check_branch
      %32 = sbr.rel (0) target = $region21
    $region20: #{qnetwork_forward.1} parent=1 // pred_region
      _
    $region21: #{qnetwork_forward.1} parent=1 // pred_fallthru
      _
    // Predicated region
    $region22: #{qnetwork_forward.1} parent=1 // pred_check
      _
    $region23: #{qnetwork_forward.1} parent=1 // pred_check_branch
      %34 = sbr.rel (0) target = $region25
    $region24: #{qnetwork_forward.1} parent=1 // pred_region
      _
    $region25: #{qnetwork_forward.1} parent=1 // pred_fallthru
      _
    // Predicated region
    $region26: #{qnetwork_forward.1} parent=1 // pred_check
      _
    $region27: #{qnetwork_forward.1} parent=1 // pred_check_branch
      %36 = sbr.rel (0) target = $region29
    $region28: #{qnetwork_forward.1} parent=1 // pred_region
      _
    $region29: #{qnetwork_forward.1} parent=1 // pred_fallthru
      _
    // Predicated region
    $region30: #{qnetwork_forward.1} parent=1 // pred_check
      _
    $region31: #{qnetwork_forward.1} parent=1 // pred_check_branch
      %38 = sbr.rel (0) target = $region33
    $region32: #{qnetwork_forward.1} parent=1 // pred_region
      %39 = dma.done [#allocation3], 1664
    $region33: #{qnetwork_forward.1} parent=1 // pred_fallthru
      _
    %v40 = vld [vmem:[%s0] sm:$0xff]
    %v41 = vld [vmem:[#allocation2] sm:$0xff]
    %v42 = vld [vmem:[#allocation2 + $0x8] sm:$0xff]
    %v43 = vld [vmem:[#allocation2 + $0x10] sm:$0xff]
    %v44 = vld [vmem:[#allocation2 + $0x18] sm:$0xff]
    %v45 = vld [vmem:[#allocation2 + $0x20] sm:$0xff]
    %v46 = vld [vmem:[#allocation2 + $0x28] sm:$0xff]
    %v47 = vld [vmem:[#allocation2 + $0x30] sm:$0xff]
    %v48 = vld [vmem:[#allocation2 + $0x38] sm:$0xff]
    %v49 = vld [vmem:[#allocation2 + $0x40] sm:$0xff]
    %v50 = vld [vmem:[#allocation2 + $0x48] sm:$0xff]
    %v51 = vld [vmem:[#allocation2 + $0x50] sm:$0xff]
    %v52 = vld [vmem:[#allocation2 + $0x58] sm:$0xff]
    %v53 = vld [vmem:[#allocation2 + $0x60] sm:$0xf]
    %v54 = vld [vmem:[%s2] sm:$0x1]
    %v56 = vlaneseq
    %v57 = vshrl.u32 %v56, 7
    %v58 = vsub.s32 0, %v57
    %v59 = vrot.slane %v54, %v58
    %vm61 = vcmask 818176
    %v63 = vsel %vm61, %v40, 0
    %vm65 = vcmask 1043456
    %v67 = vsel %vm65, %v53, 0
    %69 = vmatprep.subr.mxu0 0.0
    %70 = vmatpush1.msra.mxu0 %v41
    %71 = vmatprep.subr.mxu0 0.0
    %72 = vmatpush1.msra.mxu0 %v42
    %73 = vmatprep.subr.mxu0 0.0
    %74 = vmatpush1.msra.mxu0 %v43
    %75 = vmatprep.subr.mxu0 0.0
    %76 = vmatpush1.msra.mxu0 %v44
    %77 = vmatprep.subr.mxu0 0.0
    %78 = vmatpush1.msra.mxu0 %v45
    %79 = vmatprep.subr.mxu0 0.0
    %80 = vmatpush1.msra.mxu0 %v46
    %81 = vmatprep.subr.mxu0 0.0
    %82 = vmatpush1.msra.mxu0 %v47
    %83 = vmatprep.subr.mxu0 0.0
    %84 = vmatpush1.msra.mxu0 %v48
    %85 = vmatprep.subr.mxu0 0.0
    %86 = vmatpush1.msra.mxu0 %v49
    %87 = vmatprep.subr.mxu0 0.0
    %88 = vmatpush1.msra.mxu0 %v50
    %89 = vmatprep.subr.mxu0 0.0
    %90 = vmatpush1.msra.mxu0 %v51
    %91 = vmatprep.subr.mxu0 0.0
    %92 = vmatpush1.msra.mxu0 %v52
    %93 = vmatprep.subr.mxu0 0.0
    %94 = vmatpush1.msra.mxu0 %v67
    %95 = vmatprep.subr.mxu0 0.0
    %96 = vmatpush1.msra.mxu0 0.0
    %97 = vmatprep.subr.mxu0 0.0
    %98 = vmatpush1.msra.mxu0 0.0
    %99 = vmatprep.subr.mxu0 0.0
    %100 = vmatpush1.msra.mxu0 0.0
    %101 = vmatprep.subr.mxu0 0.0
    %102 = vmatpush1.msra.mxu0 0.0
    %103 = vmatprep.subr.mxu0 0.0
    %104 = vmatpush1.msra.mxu0 0.0
    %105 = vmatprep.subr.mxu0 0.0
    %106 = vmatpush1.msra.mxu0 0.0
    %107 = vmatprep.subr.mxu0 0.0
    %108 = vmatpush1.msra.mxu0 0.0
    %109 = vmatprep.subr.mxu0 0.0
    %110 = vmatpush1.msra.mxu0 0.0
    %111 = vmatprep.subr.mxu0 0.0
    %112 = vmatpush1.msra.mxu0 0.0
    %113 = vmatprep.subr.mxu0 0.0
    %114 = vmatpush1.msra.mxu0 0.0
    %115 = vmatprep.subr.mxu0 0.0
    %116 = vmatpush1.msra.mxu0 0.0
    %117 = vmatprep.subr.mxu0 0.0
    %118 = vmatpush1.msra.mxu0 0.0
    %119 = vmatprep.subr.mxu0 0.0
    %120 = vmatpush1.msra.mxu0 0.0
    %121 = vmatprep.subr.mxu0 0.0
    %122 = vmatpush1.msra.mxu0 0.0
    %123 = vmatprep.subr.mxu0 0.0
    %124 = vmatpush1.msra.mxu0 0.0
    %125 = vmatprep.subr.mxu0 0.0
    %126 = vmatpush1.msra.mxu0 0.0
    %127 = vmatprep.subr.mxu0 0.0
    %128 = vmatpush1.msra.mxu0 0.0
    %129 = vmatprep.subr.mxu0 0.0
    %130 = vmatpush1.msra.mxu0 0.0
    %131 = vmatprep.subr.mxu0 0.0
    %132 = vmatpush1.msra.mxu0 0.0
    %133 = vmatprep.mubr.f32.mxu0 0.0
    %134 = vmatmul.mubr.f32.gmra.mrb[0].mxu0 %v63
    %v135 = vpop.f32.mrb[0].mxu0
    %v136 = vadd.f32 %v59, %v135
    %v137 = vpop.f32.mrb[0].mxu0
    %138 = vdwg.mxu0
    %v139 = vmax.f32 %v136, 0.0
    %v140 = vld [vmem:[%s3] sm:$0xff]
    %v141 = vld [vmem:[%s3 + $0x8] sm:$0xff]
    %v142 = vld [vmem:[%s3 + $0x10] sm:$0xff]
    %v143 = vld [vmem:[%s3 + $0x18] sm:$0xff]
    %v144 = vld [vmem:[%s3 + $0x20] sm:$0xff]
    %v145 = vld [vmem:[%s3 + $0x28] sm:$0xff]
    %v146 = vld [vmem:[%s3 + $0x30] sm:$0xff]
    %v147 = vld [vmem:[%s3 + $0x38] sm:$0xff]
    %v148 = vld [vmem:[%s3 + $0x40] sm:$0xff]
    %v149 = vld [vmem:[%s3 + $0x48] sm:$0xff]
    %v150 = vld [vmem:[%s3 + $0x50] sm:$0xff]
    %v151 = vld [vmem:[%s3 + $0x58] sm:$0xff]
    %v152 = vld [vmem:[%s3 + $0x60] sm:$0xff]
    %v153 = vld [vmem:[%s3 + $0x68] sm:$0xff]
    %v154 = vld [vmem:[%s3 + $0x70] sm:$0xff]
    %v155 = vld [vmem:[%s3 + $0x78] sm:$0xff]
    %v156 = vld [vmem:[%s4] sm:$0x1]
    %v158 = vlaneseq
    %v159 = vshrl.u32 %v158, 7
    %v160 = vsub.s32 0, %v159
    %v161 = vrot.slane %v156, %v160
    %163 = vmatprep.subr.mxu0 0.0
    %164 = vmatpush1.msra.mxu0 %v140
    %165 = vmatprep.subr.mxu0 0.0
    %166 = vmatpush1.msra.mxu0 %v141
    %167 = vmatprep.subr.mxu0 0.0
    %168 = vmatpush1.msra.mxu0 %v142
    %169 = vmatprep.subr.mxu0 0.0
    %170 = vmatpush1.msra.mxu0 %v143
    %171 = vmatprep.subr.mxu0 0.0
    %172 = vmatpush1.msra.mxu0 %v144
    %173 = vmatprep.subr.mxu0 0.0
    %174 = vmatpush1.msra.mxu0 %v145
    %175 = vmatprep.subr.mxu0 0.0
    %176 = vmatpush1.msra.mxu0 %v146
    %177 = vmatprep.subr.mxu0 0.0
    %178 = vmatpush1.msra.mxu0 %v147
    %179 = vmatprep.subr.mxu0 0.0
    %180 = vmatpush1.msra.mxu0 %v148
    %181 = vmatprep.subr.mxu0 0.0
    %182 = vmatpush1.msra.mxu0 %v149
    %183 = vmatprep.subr.mxu0 0.0
    %184 = vmatpush1.msra.mxu0 %v150
    %185 = vmatprep.subr.mxu0 0.0
    %186 = vmatpush1.msra.mxu0 %v151
    %187 = vmatprep.subr.mxu0 0.0
    %188 = vmatpush1.msra.mxu0 %v152
    %189 = vmatprep.subr.mxu0 0.0
    %190 = vmatpush1.msra.mxu0 %v153
    %191 = vmatprep.subr.mxu0 0.0
    %192 = vmatpush1.msra.mxu0 %v154
    %193 = vmatprep.subr.mxu0 0.0
    %194 = vmatpush1.msra.mxu0 %v155
    %195 = vmatprep.subr.mxu0 0.0
    %196 = vmatpush1.msra.mxu0 0.0
    %197 = vmatprep.subr.mxu0 0.0
    %198 = vmatpush1.msra.mxu0 0.0
    %199 = vmatprep.subr.mxu0 0.0
    %200 = vmatpush1.msra.mxu0 0.0
    %201 = vmatprep.subr.mxu0 0.0
    %202 = vmatpush1.msra.mxu0 0.0
    %203 = vmatprep.subr.mxu0 0.0
    %204 = vmatpush1.msra.mxu0 0.0
    %205 = vmatprep.subr.mxu0 0.0
    %206 = vmatpush1.msra.mxu0 0.0
    %207 = vmatprep.subr.mxu0 0.0
    %208 = vmatpush1.msra.mxu0 0.0
    %209 = vmatprep.subr.mxu0 0.0
    %210 = vmatpush1.msra.mxu0 0.0
    %211 = vmatprep.subr.mxu0 0.0
    %212 = vmatpush1.msra.mxu0 0.0
    %213 = vmatprep.subr.mxu0 0.0
    %214 = vmatpush1.msra.mxu0 0.0
    %215 = vmatprep.subr.mxu0 0.0
    %216 = vmatpush1.msra.mxu0 0.0
    %217 = vmatprep.subr.mxu0 0.0
    %218 = vmatpush1.msra.mxu0 0.0
    %219 = vmatprep.subr.mxu0 0.0
    %220 = vmatpush1.msra.mxu0 0.0
    %221 = vmatprep.subr.mxu0 0.0
    %222 = vmatpush1.msra.mxu0 0.0
    %223 = vmatprep.subr.mxu0 0.0
    %224 = vmatpush1.msra.mxu0 0.0
    %225 = vmatprep.subr.mxu0 0.0
    %226 = vmatpush1.msra.mxu0 0.0
    %227 = vmatprep.mubr.f32.mxu0 0.0
    %228 = vmatmul.mubr.f32.gmra.mrb[0].mxu0 %v139
    %v229 = vpop.f32.mrb[0].mxu0
    %v230 = vadd.f32 %v161, %v229
    %v231 = vpop.f32.mrb[0].mxu0
    %232 = vdwg.mxu0
    %v233 = vmax.f32 %v230, 0.0
    %v234 = vld [vmem:[%s5] sm:$0xff]
    %v235 = vld [vmem:[%s5 + $0x8] sm:$0xff]
    %v236 = vld [vmem:[%s5 + $0x10] sm:$0xff]
    %v237 = vld [vmem:[%s5 + $0x18] sm:$0xff]
    %v238 = vld [vmem:[%s5 + $0x20] sm:$0xff]
    %v239 = vld [vmem:[%s5 + $0x28] sm:$0xff]
    %v240 = vld [vmem:[%s5 + $0x30] sm:$0xff]
    %v241 = vld [vmem:[%s5 + $0x38] sm:$0xff]
    %v242 = vld [vmem:[%s5 + $0x40] sm:$0xff]
    %v243 = vld [vmem:[%s5 + $0x48] sm:$0xff]
    %v244 = vld [vmem:[%s5 + $0x50] sm:$0xff]
    %v245 = vld [vmem:[%s5 + $0x58] sm:$0xff]
    %v246 = vld [vmem:[%s5 + $0x60] sm:$0xff]
    %v247 = vld [vmem:[%s5 + $0x68] sm:$0xff]
    %v248 = vld [vmem:[%s5 + $0x70] sm:$0xff]
    %v249 = vld [vmem:[%s5 + $0x78] sm:$0xff]
    %v250 = vld [vmem:[%s6] sm:$0x1]
    %v252 = vlaneseq
    %v253 = vshrl.u32 %v252, 7
    %v254 = vsub.s32 0, %v253
    %v255 = vrot.slane %v250, %v254
    %257 = vmatprep.subr.mxu0 0.0
    %258 = vmatpush1.msra.mxu0 %v234
    %259 = vmatprep.subr.mxu0 0.0
    %260 = vmatpush1.msra.mxu0 %v235
    %261 = vmatprep.subr.mxu0 0.0
    %262 = vmatpush1.msra.mxu0 %v236
    %263 = vmatprep.subr.mxu0 0.0
    %264 = vmatpush1.msra.mxu0 %v237
    %265 = vmatprep.subr.mxu0 0.0
    %266 = vmatpush1.msra.mxu0 %v238
    %267 = vmatprep.subr.mxu0 0.0
    %268 = vmatpush1.msra.mxu0 %v239
    %269 = vmatprep.subr.mxu0 0.0
    %270 = vmatpush1.msra.mxu0 %v240
    %271 = vmatprep.subr.mxu0 0.0
    %272 = vmatpush1.msra.mxu0 %v241
    %273 = vmatprep.subr.mxu0 0.0
    %274 = vmatpush1.msra.mxu0 %v242
    %275 = vmatprep.subr.mxu0 0.0
    %276 = vmatpush1.msra.mxu0 %v243
    %277 = vmatprep.subr.mxu0 0.0
    %278 = vmatpush1.msra.mxu0 %v244
    %279 = vmatprep.subr.mxu0 0.0
    %280 = vmatpush1.msra.mxu0 %v245
    %281 = vmatprep.subr.mxu0 0.0
    %282 = vmatpush1.msra.mxu0 %v246
    %283 = vmatprep.subr.mxu0 0.0
    %284 = vmatpush1.msra.mxu0 %v247
    %285 = vmatprep.subr.mxu0 0.0
    %286 = vmatpush1.msra.mxu0 %v248
    %287 = vmatprep.subr.mxu0 0.0
    %288 = vmatpush1.msra.mxu0 %v249
    %289 = vmatprep.subr.mxu0 0.0
    %290 = vmatpush1.msra.mxu0 0.0
    %291 = vmatprep.subr.mxu0 0.0
    %292 = vmatpush1.msra.mxu0 0.0
    %293 = vmatprep.subr.mxu0 0.0
    %294 = vmatpush1.msra.mxu0 0.0
    %295 = vmatprep.subr.mxu0 0.0
    %296 = vmatpush1.msra.mxu0 0.0
    %297 = vmatprep.subr.mxu0 0.0
    %298 = vmatpush1.msra.mxu0 0.0
    %299 = vmatprep.subr.mxu0 0.0
    %300 = vmatpush1.msra.mxu0 0.0
    %301 = vmatprep.subr.mxu0 0.0
    %302 = vmatpush1.msra.mxu0 0.0
    %303 = vmatprep.subr.mxu0 0.0
    %304 = vmatpush1.msra.mxu0 0.0
    %305 = vmatprep.subr.mxu0 0.0
    %306 = vmatpush1.msra.mxu0 0.0
    %307 = vmatprep.subr.mxu0 0.0
    %308 = vmatpush1.msra.mxu0 0.0
    %309 = vmatprep.subr.mxu0 0.0
    %310 = vmatpush1.msra.mxu0 0.0
    %311 = vmatprep.subr.mxu0 0.0
    %312 = vmatpush1.msra.mxu0 0.0
    %313 = vmatprep.subr.mxu0 0.0
    %314 = vmatpush1.msra.mxu0 0.0
    %315 = vmatprep.subr.mxu0 0.0
    %316 = vmatpush1.msra.mxu0 0.0
    %317 = vmatprep.subr.mxu0 0.0
    %318 = vmatpush1.msra.mxu0 0.0
    %319 = vmatprep.subr.mxu0 0.0
    %320 = vmatpush1.msra.mxu0 0.0
    %321 = vmatprep.mubr.f32.mxu0 0.0
    %322 = vmatmul.mubr.f32.gmra.mrb[0].mxu0 %v233
    %v323 = vpop.f32.mrb[0].mxu0
    %v324 = vadd.f32 %v255, %v323
    %v325 = vpop.f32.mrb[0].mxu0
    %326 = vdwg.mxu0
    %vm327 = vcmask 64512
    %328 = vst.msk [vmem:[%s7] sm:$0xff] %vm327, %v324
    // Predicated region
    $region34: #{qnetwork_forward.1} parent=1 // pred_check
      _
    $region35: #{qnetwork_forward.1} parent=1 // pred_check_branch
      %330 = sbr.rel (0) target = $region37
    $region36: #{qnetwork_forward.1} parent=1 // pred_region
      _
    $region37: #{qnetwork_forward.1} parent=1 // pred_fallthru
      _
    // Predicated region
    $region38: #{qnetwork_forward.1} parent=1 // pred_check
      _
    $region39: #{qnetwork_forward.1} parent=1 // pred_check_branch
      %332 = sbr.rel (0) target = $region41
    $region40: #{qnetwork_forward.1} parent=1 // pred_region
      _
    $region41: #{qnetwork_forward.1} parent=1 // pred_fallthru
      _
    %333 = vsyncpa [#allocation3], 1

</llo_original>
